<compile_context>
chip_gen: v6e
topology: v6e:2x2x1
jax: 0.10.0
libtpu: 0.0.40
codegen_flags: <defaults>
</compile_context>

<pallas_src>
import functools

import jax
import jax.numpy as jnp
from jax.experimental import pallas as pl
from jax.experimental.pallas import tpu as pltpu

LANE = 128  # pad the matmul RHS (weight columns) to a full lane width


def _linear_kernel(x_ref, w_ref, b_ref, o_ref):
    # x_ref: [TB, D_in]        per-grid-step batch tile
    # w_ref: [D_in, LANE]      VMEM-resident, zero-padded columns past D_out
    # b_ref: [1, D_out]        VMEM-resident
    # o_ref: [TB, D_out]       unpadded output tile
    d_out = o_ref.shape[1]
    acc = jnp.dot(x_ref[...], w_ref[...], preferred_element_type=jnp.float32)
    o_ref[...] = (acc[:, :d_out] + b_ref[...]).astype(o_ref.dtype)


def _round_up(n, m):
    return ((n + m - 1) // m) * m


@functools.partial(jax.jit, static_argnames=("block_rows",))
def logistic_regression_forward(x, weight, bias, *, block_rows=4096):
    """y = x @ weight + bias.

    x:      [B, input_dim]            float32
    weight: [input_dim, output_dim]   float32 (transposed vs PyTorch [out, in])
    bias:   [output_dim]              float32
    returns [B, output_dim]           float32
    """
    B, D_in = x.shape
    D_out = weight.shape[1]

    # Lane-dense RHS for the matmul (tiny, done once under jit).
    n_pad = _round_up(D_out, LANE)
    w_pad = jnp.zeros((D_in, n_pad), weight.dtype).at[:, :D_out].set(weight)
    b2 = bias.reshape(1, D_out)

    # Batch tile: multiple of 8, large enough to amortize per-step overhead,
    # but capped near ceil(B/2) so there are >= 2 grid steps when B allows
    # (lets the "parallel" axis split across v7x's two TensorCores).
    half = _round_up(pl.cdiv(B, 2), 8)
    tb = max(8, min(_round_up(block_rows, 8), half))
    grid = (pl.cdiv(B, tb),)  # ragged last block handled by Pallas masking

    return pl.pallas_call(
        _linear_kernel,
        out_shape=jax.ShapeDtypeStruct((B, D_out), x.dtype),
        grid_spec=pltpu.PrefetchScalarGridSpec(
            num_scalar_prefetch=0,
            grid=grid,
            in_specs=[
                # x: stream batch tiles across the grid.
                pl.BlockSpec((tb, D_in), lambda i: (i, 0)),
                # weight / bias: constant block index -> fetched once, VMEM-resident.
                pl.BlockSpec((D_in, n_pad), lambda i: (0, 0)),
                pl.BlockSpec((1, D_out), lambda i: (0, 0)),
            ],
            out_specs=pl.BlockSpec((tb, D_out), lambda i: (i, 0)),
        ),
        compiler_params=pltpu.CompilerParams(
            dimension_semantics=("parallel",),
        ),
    )(x, w_pad, b2)


def init_params(key, input_dim=60, output_dim=10):
    # Deterministic init mimicking PyTorch nn.Linear default:
    # U(-1/sqrt(fan_in), 1/sqrt(fan_in)) for both weight and bias.
    kw, kb = jax.random.split(key)
    bound = 1.0 / jnp.sqrt(jnp.float32(input_dim))
    # Stored already transposed: [input_dim, output_dim]
    weight = jax.random.uniform(
        kw, (input_dim, output_dim), jnp.float32, -bound, bound)
    bias = jax.random.uniform(
        kb, (output_dim,), jnp.float32, -bound, bound)
    return weight, bias


if __name__ == "__main__":
    key = jax.random.PRNGKey(0)
    kx, kp = jax.random.split(key)

    batch, input_dim, output_dim = 8, 60, 10
    x = jax.random.normal(kx, (batch, input_dim), jnp.float32)
    weight, bias = init_params(kp, input_dim, output_dim)

    y = logistic_regression_forward(x, weight, bias)
    y = jax.block_until_ready(y)

    # Sanity check against plain JAX reference.
    y_ref = x @ weight + bias
    assert y.shape == (batch, output_dim)
    assert jnp.allclose(y, y_ref, atol=1e-5, rtol=1e-5)

    # Multi-tile batch that is NOT a multiple of the tile -> exercises the
    # ragged-last-block (masked OOB write) path and a >1-step grid.
    big_batch = 1041
    xb = jax.random.normal(kx, (big_batch, input_dim), jnp.float32)
    yb = jax.block_until_ready(logistic_regression_forward(xb, weight, bias))
    yb_ref = xb @ weight + bias
    assert yb.shape == (big_batch, output_dim)
    assert jnp.allclose(yb, yb_ref, atol=1e-4, rtol=1e-5)

    print("KERNEL_OK")
</pallas_src>

<mosaic_0001>
module attributes {stable_mosaic.version = 11 : i64} {
  func.func @_linear_kernel(%arg0: i32, %arg1: memref<8x60xf32, #tpu.memory_space<vmem>>, %arg2: memref<60x128xf32, #tpu.memory_space<vmem>>, %arg3: memref<1x10xf32, #tpu.memory_space<vmem>>, %arg4: memref<8x10xf32, #tpu.memory_space<vmem>>) attributes {dimension_semantics = [#tpu.dimension_semantics<parallel>], iteration_bounds = array<i64: 1>, scalar_prefetch = 0 : i64, scratch_operands = 0 : i64, tpu.core_type = #tpu.core_type<tc>, window_params = [{transform_indices = @transform_0, window_bounds = array<i64: 8, 60>}, {pipeline_mode = #tpu.pipeline_mode<synchronous>, transform_indices = @transform_1, window_bounds = array<i64: 60, 128>}, {pipeline_mode = #tpu.pipeline_mode<synchronous>, transform_indices = @transform_2, window_bounds = array<i64: 1, 10>}, {transform_indices = @transform_3, window_bounds = array<i64: 8, 10>}]} {
    %c0 = arith.constant 0 : index
    %c0_0 = arith.constant 0 : index
    %0 = vector.load %arg1[%c0, %c0_0] : memref<8x60xf32, #tpu.memory_space<vmem>>, vector<8x60xf32>
    %c0_1 = arith.constant 0 : index
    %c0_2 = arith.constant 0 : index
    %1 = vector.load %arg2[%c0_1, %c0_2] : memref<60x128xf32, #tpu.memory_space<vmem>>, vector<60x128xf32>
    %cst = arith.constant dense<0.000000e+00> : vector<8x128xf32>
    %2 = tpu.matmul %0, %1, %cst {dimension_numbers = #tpu.dot_dimension_numbers<[1], [0], [0], [1], [0, 0, 1, 1], [], []>} : vector<8x60xf32>, vector<60x128xf32>, vector<8x128xf32> -> vector<8x128xf32>
    %3 = vector.extract_strided_slice %2 {offsets = [0, 0], sizes = [8, 10], strides = [1, 1]} : vector<8x128xf32> to vector<8x10xf32>
    %c0_3 = arith.constant 0 : index
    %c0_4 = arith.constant 0 : index
    %4 = vector.load %arg3[%c0_3, %c0_4] : memref<1x10xf32, #tpu.memory_space<vmem>>, vector<1x10xf32>
    %5 = vector.broadcast %4 : vector<1x10xf32> to vector<8x10xf32>
    %6 = arith.addf %3, %5 : vector<8x10xf32>
    %c0_5 = arith.constant 0 : index
    %c0_6 = arith.constant 0 : index
    %7 = vector.load %arg4[%c0_5, %c0_6] : memref<8x10xf32, #tpu.memory_space<vmem>>, vector<8x10xf32>
    tpu.vector_store %arg4[%c0_5, %c0_6], %6 {strides = array<i32>} : memref<8x10xf32, #tpu.memory_space<vmem>>, vector<8x10xf32>,
    return
  }
  func.func @transform_0(%arg0: i32) -> (i32, i32) {
    %c0_i32 = arith.constant 0 : i32
    %c0_i32_0 = arith.constant 0 : i32
    return %arg0, %c0_i32 : i32, i32
  }
  func.func @transform_1(%arg0: i32) -> (i32, i32) {
    %c0_i32 = arith.constant 0 : i32
    %c0_i32_0 = arith.constant 0 : i32
    %c0_i32_1 = arith.constant 0 : i32
    return %c0_i32, %c0_i32_0 : i32, i32
  }
  func.func @transform_2(%arg0: i32) -> (i32, i32) {
    %c0_i32 = arith.constant 0 : i32
    %c0_i32_0 = arith.constant 0 : i32
    %c0_i32_1 = arith.constant 0 : i32
    return %c0_i32, %c0_i32_0 : i32, i32
  }
  func.func @transform_3(%arg0: i32) -> (i32, i32) {
    %c0_i32 = arith.constant 0 : i32
    %c0_i32_0 = arith.constant 0 : i32
    return %arg0, %c0_i32 : i32, i32
  }
}

</mosaic_0001>

<llo_original>
// kernel: logistic_regression_forward.1
$region0: #{logistic_regression_forward.1}
  #allocation0 [shape = 'u32[]', space=smem, size = 0x4, offset = 0x4, fixed_abs, tag = 'smem constant byte address 0x4 - core index']
  #allocation1 [shape = 'u32[144,128]{1,0:T(1,128)}', space=vmem, size = 0x12000, scoped, tag = 'internal scratch']
  %s0 = inlined_call_operand.vmem [shape: f32[8,60], index: 0, kind: input, shape index: {}]
  %s1 = inlined_call_operand.vmem [shape: f32[60,128], index: 1, kind: input, shape index: {}]
  %s2 = inlined_call_operand.vmem [shape: f32[1,10], index: 2, kind: input, shape index: {}]
  %s3 = inlined_call_operand.hbm [shape: f32[8,10], index: 3, kind: output, shape index: {}]
  %s4 = sld [smem:[#allocation0]]
  $region22: #{logistic_regression_forward.1} parent=0
    _
  %s6 = ssub.s32 1, %s4
  %s7 = scalar_select 0, %s6, %s4
  $region1: #{logistic_regression_forward.1} parent=0
    #allocation2 [shape = 'u8[4096]{0}', space=vmem, size = 0x1000, scoped, tag = 'output window, operand 0, single buffered']
    #allocation3 [shape = 's32[1]{0}', space=sflag, size = 0x4, scoped, tag = 'scoped memory for logistic_regression_forward.1']
    %8 = vsyncpa [#allocation3], 0
    // Predicated region
    $region2: #{logistic_regression_forward.1} parent=1 // pred_check
      _
    $region3: #{logistic_regression_forward.1} parent=1 // pred_check_branch
      %10 = sbr.rel (0) target = $region5
    $region4: #{logistic_regression_forward.1} parent=1 // pred_region
      _
    $region5: #{logistic_regression_forward.1} parent=1 // pred_fallthru
      _
    // Predicated region
    $region6: #{logistic_regression_forward.1} parent=1 // pred_check
      _
    $region7: #{logistic_regression_forward.1} parent=1 // pred_check_branch
      %12 = sbr.rel (0) target = $region9
    $region8: #{logistic_regression_forward.1} parent=1 // pred_region
      _
    $region9: #{logistic_regression_forward.1} parent=1 // pred_fallthru
      _
    // Predicated region
    $region10: #{logistic_regression_forward.1} parent=1 // pred_check
      _
    $region11: #{logistic_regression_forward.1} parent=1 // pred_check_branch
      %14 = sbr.rel (0) target = $region13
    $region12: #{logistic_regression_forward.1} parent=1 // pred_region
      _
    $region13: #{logistic_regression_forward.1} parent=1 // pred_fallthru
      _
    %v15 = vld [vmem:[%s0] sm:$0xff]
    %v16 = vld [vmem:[%s1] sm:$0xff]
    %v17 = vld [vmem:[%s1 + $0x8] sm:$0xff]
    %v18 = vld [vmem:[%s1 + $0x10] sm:$0xff]
    %v19 = vld [vmem:[%s1 + $0x18] sm:$0xff]
    %v20 = vld [vmem:[%s1 + $0x20] sm:$0xff]
    %v21 = vld [vmem:[%s1 + $0x28] sm:$0xff]
    %v22 = vld [vmem:[%s1 + $0x30] sm:$0xff]
    %v23 = vld [vmem:[%s1 + $0x38] sm:$0xf]
    %vm24 = vcmask 490496
    %v26 = vsel %vm24, %v15, 0
    %vm28 = vcmask 1043456
    %v30 = vsel %vm28, %v23, 0
    %32 = vmatprep.subr.mxu0 0.0
    %33 = vmatpush1.msra.mxu0 0.0
    %34 = vmatprep.subr.mxu0 0.0
    %35 = vmatpush1.msra.mxu0 0.0
    %36 = vmatprep.subr.mxu0 0.0
    %37 = vmatpush1.msra.mxu0 0.0
    %38 = vmatprep.subr.mxu0 0.0
    %39 = vmatpush1.msra.mxu0 0.0
    %40 = vmatprep.subr.mxu0 0.0
    %41 = vmatpush1.msra.mxu0 0.0
    %42 = vmatprep.subr.mxu0 0.0
    %43 = vmatpush1.msra.mxu0 0.0
    %44 = vmatprep.subr.mxu0 0.0
    %45 = vmatpush1.msra.mxu0 0.0
    %46 = vmatprep.subr.mxu0 0.0
    %47 = vmatpush1.msra.mxu0 0.0
    %48 = vmatprep.subr.mxu0 0.0
    %49 = vmatpush1.msra.mxu0 %v30
    %50 = vmatprep.subr.mxu0 0.0
    %51 = vmatpush1.msra.mxu0 %v22
    %52 = vmatprep.subr.mxu0 0.0
    %53 = vmatpush1.msra.mxu0 %v21
    %54 = vmatprep.subr.mxu0 0.0
    %55 = vmatpush1.msra.mxu0 %v20
    %56 = vmatprep.subr.mxu0 0.0
    %57 = vmatpush1.msra.mxu0 %v19
    %58 = vmatprep.subr.mxu0 0.0
    %59 = vmatpush1.msra.mxu0 %v18
    %60 = vmatprep.subr.mxu0 0.0
    %61 = vmatpush1.msra.mxu0 %v17
    %62 = vmatprep.subr.mxu0 0.0
    %63 = vmatpush1.msra.mxu0 %v16
    %64 = vmatprep.subr.mxu0 0.0
    %65 = vmatpush2.msra.mxu0 0.0
    %66 = vmatprep.subr.mxu0 0.0
    %67 = vmatpush2.msra.mxu0 0.0
    %68 = vmatprep.subr.mxu0 0.0
    %69 = vmatpush2.msra.mxu0 0.0
    %70 = vmatprep.subr.mxu0 0.0
    %71 = vmatpush2.msra.mxu0 0.0
    %72 = vmatprep.subr.mxu0 0.0
    %73 = vmatpush2.msra.mxu0 0.0
    %74 = vmatprep.subr.mxu0 0.0
    %75 = vmatpush2.msra.mxu0 0.0
    %76 = vmatprep.subr.mxu0 0.0
    %77 = vmatpush2.msra.mxu0 0.0
    %78 = vmatprep.subr.mxu0 0.0
    %79 = vmatpush2.msra.mxu0 0.0
    %80 = vmatprep.subr.mxu0 0.0
    %81 = vmatpush2.msra.mxu0 0.0
    %82 = vmatprep.subr.mxu0 0.0
    %83 = vmatpush2.msra.mxu0 0.0
    %84 = vmatprep.subr.mxu0 0.0
    %85 = vmatpush2.msra.mxu0 0.0
    %86 = vmatprep.subr.mxu0 0.0
    %87 = vmatpush2.msra.mxu0 0.0
    %88 = vmatprep.subr.mxu0 0.0
    %89 = vmatpush2.msra.mxu0 0.0
    %90 = vmatprep.subr.mxu0 0.0
    %91 = vmatpush2.msra.mxu0 0.0
    %92 = vmatprep.subr.mxu0 0.0
    %93 = vmatpush2.msra.mxu0 0.0
    %94 = vmatprep.subr.mxu0 0.0
    %95 = vmatpush2.msra.mxu0 0.0
    %96 = vmatprep.mubr.f32.mxu0 0.0
    %97 = vmatmul.mubr.f32.gmra.mxu0 %v26
    %v98 = vpop.f32.mrf.mxu0
    %v99 = vadd.f32 0.0, %v98
    %v100 = vpop.f32.mrf.mxu0
    %101 = vdwg.mxu0
    %v102 = vld [vmem:[%s2] sm:$0x1]
    %v104 = vlaneseq
    %v105 = vshrl.u32 %v104, 7
    %v106 = vsub.s32 0, %v105
    %v107 = vrot.slane %v102, %v106
    %v109 = vadd.f32 %v99, %v107
    %vm110 = vcmask 80896
    %111 = vst.msk [vmem:[#allocation2] sm:$0xff] %vm110, %v109
    // Predicated region
    $region14: #{logistic_regression_forward.1} parent=1 // pred_check
      _
    $region15: #{logistic_regression_forward.1} parent=1 // pred_check_branch
      %113 = sbr.rel (0) target = $region17
    $region16: #{logistic_regression_forward.1} parent=1 // pred_region
      %s115 = ssub.s32 128, 128
      %116 = vsyncadd [#allocation3], %s115
      %s118 = sshll.u32 [#allocation2], 4
      %s119 = int_to_ptr.vmem [resolvable:$true] %s118
      %121 = dma.vmem_to_hbm [thread:$0]  %s119, 128, %s3, [#allocation3]
    $region17: #{logistic_regression_forward.1} parent=1 // pred_fallthru
      _
    // Predicated region
    $region18: #{logistic_regression_forward.1} parent=1 // pred_check
      _
    $region19: #{logistic_regression_forward.1} parent=1 // pred_check_branch
      %123 = sbr.rel (0) target = $region21
    $region20: #{logistic_regression_forward.1} parent=1 // pred_region
      %124 = dma.done [#allocation3], 128
    $region21: #{logistic_regression_forward.1} parent=1 // pred_fallthru
      _
    %125 = vsyncpa [#allocation3], 1

</llo_original>
